<compile_context>
chip_gen: v6e
topology: v6e:2x2x1
jax: 0.10.0
libtpu: 0.0.40
codegen_flags: <defaults>
</compile_context>

<pallas_src>
import functools
import math

import jax
import jax.numpy as jnp
from jax import lax
from jax.experimental import pallas as pl
from jax.experimental.pallas import tpu as pltpu


def _round_up(n, m):
    return ((n + m - 1) // m) * m


def _pick_tile(s_pad, preferred=256):
    """Largest of {preferred, 128} that divides s_pad (s_pad is a multiple of 128)."""
    return preferred if s_pad % preferred == 0 else 128


def _vmem_limit_bytes(estimate):
    """Clamp the scoped-VMEM request: >= 32 MiB, <= ~7/8 of physical VMEM, <= 96 MiB."""
    floor = 32 * 1024 * 1024
    cap = 96 * 1024 * 1024
    try:
        cap = min(cap, int(pltpu.get_tpu_info().vmem_capacity_bytes) * 7 // 8)
    except Exception:
        pass
    return int(max(floor, min(int(estimate), cap)))


# --------------------------------------------------------------------------
# Kernel A: fused QKV projection.  One wide (TS, D_pad) @ (D_pad, 3*D_pad) MXU
# pass per tile; K is stored pre-transposed for the attention kernel.
# --------------------------------------------------------------------------
def _qkv_proj_kernel(x_ref, w_ref, b_ref, q_ref, kt_ref, v_ref, *, D_pad):
    x = x_ref[0]                                                   # (TS, D_pad)
    qkv = jnp.dot(x, w_ref[...], preferred_element_type=jnp.float32)
    qkv = qkv + b_ref[...]                                         # f32 (TS, 3*D_pad)
    q_ref[0] = qkv[:, :D_pad].astype(q_ref.dtype)                  # (TS, D_pad)
    kt_ref[0] = qkv[:, D_pad:2 * D_pad].T.astype(kt_ref.dtype)     # (D_pad, TS)
    v_ref[0] = qkv[:, 2 * D_pad:].astype(v_ref.dtype)              # (TS, D_pad)


# --------------------------------------------------------------------------
# Kernel B: scaled dot-product attention on one (batch, query-tile) cell.
# No cross-step scratch -> both grid axes "parallel".
# --------------------------------------------------------------------------
def _attention_kernel(q_ref, kt_ref, v_ref, out_ref, attn_ref, *,
                      S_valid, S_pad, scale, compute_dtype):
    q = q_ref[0]                                                   # (TQ, D_pad)
    kt = kt_ref[0]                                                 # (D_pad, S_pad)
    v = v_ref[0]                                                   # (S_pad, D_pad)

    # Q @ K^T as a plain MXU matmul (K already stored transposed).
    scores = jnp.dot(q, kt, preferred_element_type=jnp.float32) * scale  # (TQ, S_pad)

    # Mask padded key positions (mirrors masked_fill(mask == 0, -1e9)); static skip
    # when there is no sequence padding.
    if S_valid < S_pad:
        key_idx = lax.broadcasted_iota(jnp.int32, scores.shape, 1)
        scores = jnp.where(key_idx < S_valid, scores, -1e9)

    # Numerically stable softmax in f32.  exp(-1e9 - m) underflows to 0, so no
    # extra post-exp select is needed.
    m = jnp.max(scores, axis=-1, keepdims=True)
    e = jnp.exp(scores - m)
    denom = jnp.sum(e, axis=-1, keepdims=True)
    r = pl.reciprocal(denom, approx=True)      # EUP slot
    r = r * (2.0 - denom * r)                  # one Newton step -> ~exact divide
    attn = e * r                                                   # (TQ, S_pad) f32

    out = jnp.dot(attn.astype(compute_dtype), v,
                  preferred_element_type=jnp.float32)              # (TQ, D_pad)

    out_ref[0] = out.astype(out_ref.dtype)
    attn_ref[0] = attn.astype(attn_ref.dtype)


def self_attention(x, wq, bq, wk, bk, wv, bv, *,
                   compute_dtype=None, attn_dtype=None):
    """x: (B, S, D). Weights (D, D) pre-transposed (x @ W); biases (1, D).

    compute_dtype: dtype of MXU operands (default bfloat16; accumulation is f32).
    attn_dtype:    dtype of the returned attention-weights tensor (default x.dtype;
                   pass jnp.bfloat16 to halve the O(S^2) HBM writeback).
    """
    B, S, D = x.shape
    out_dtype = x.dtype
    if compute_dtype is None:
        compute_dtype = jnp.bfloat16
    if attn_dtype is None:
        attn_dtype = out_dtype
    comp_b = jnp.dtype(compute_dtype).itemsize
    out_b = jnp.dtype(out_dtype).itemsize
    attn_b = jnp.dtype(attn_dtype).itemsize

    # Lane-dense padding: sequence and feature dims to multiples of 128.
    S_pad = _round_up(S, 128)
    D_pad = _round_up(D, 128)
    TS = _pick_tile(S_pad)      # projection seq tile
    TQ = _pick_tile(S_pad)      # attention query tile
    scale = 1.0 / math.sqrt(D)

    pad_w = lambda w: jnp.pad(w, ((0, D_pad - D), (0, D_pad - D)))
    pad_b = lambda b: jnp.pad(b, ((0, 0), (0, D_pad - D)))
    w_qkv = jnp.concatenate([pad_w(wq), pad_w(wk), pad_w(wv)], axis=1).astype(compute_dtype)
    b_qkv = jnp.concatenate([pad_b(bq), pad_b(bk), pad_b(bv)], axis=1).astype(jnp.float32)
    x_pad = jnp.pad(x, ((0, 0), (0, S_pad - S), (0, D_pad - D))).astype(compute_dtype)

    # ---------------- Kernel A: fused QKV projection ----------------
    proj_est = (2 * TS * D_pad * comp_b                 # x tile (double-buffered)
                + 2 * D_pad * 3 * D_pad * comp_b        # fused weight (double-buffered)
                + 2 * 3 * TS * D_pad * comp_b           # q / kT / v output tiles
                + 4 * TS * 3 * D_pad * 4)               # f32 working set headroom
    q_proj, k_t, v_proj = pl.pallas_call(
        functools.partial(_qkv_proj_kernel, D_pad=D_pad),
        out_shape=(
            jax.ShapeDtypeStruct((B, S_pad, D_pad), compute_dtype),   # Q
            jax.ShapeDtypeStruct((B, D_pad, S_pad), compute_dtype),   # K^T
            jax.ShapeDtypeStruct((B, S_pad, D_pad), compute_dtype),   # V
        ),
        grid_spec=pltpu.PrefetchScalarGridSpec(
            num_scalar_prefetch=0,
            grid=(B, S_pad // TS),
            in_specs=[
                pl.BlockSpec((1, TS, D_pad), lambda b, s: (b, s, 0)),     # x tile
                pl.BlockSpec((D_pad, 3 * D_pad), lambda b, s: (0, 0)),    # fused W (grid-invariant)
                pl.BlockSpec((1, 3 * D_pad), lambda b, s: (0, 0)),        # fused bias
            ],
            out_specs=[
                pl.BlockSpec((1, TS, D_pad), lambda b, s: (b, s, 0)),     # Q
                pl.BlockSpec((1, D_pad, TS), lambda b, s: (b, 0, s)),     # K^T (transposed store)
                pl.BlockSpec((1, TS, D_pad), lambda b, s: (b, s, 0)),     # V
            ],
        ),
        compiler_params=pltpu.CompilerParams(
            dimension_semantics=("parallel", "parallel"),
            vmem_limit_bytes=_vmem_limit_bytes(proj_est),
        ),
    )(x_pad, w_qkv, b_qkv)

    # ---------------- Kernel B: attention ----------------
    attn_est = (2 * 2 * S_pad * D_pad * comp_b          # K^T + V (double-buffered, grid-invariant)
                + 2 * TQ * D_pad * comp_b               # Q tile
                + 2 * TQ * D_pad * out_b                # output tile
                + 2 * TQ * S_pad * attn_b               # attn-weights tile
                + 4 * TQ * S_pad * 4)                   # f32 scores/exp working set
    kernel = functools.partial(
        _attention_kernel, S_valid=S, S_pad=S_pad, scale=scale,
        compute_dtype=compute_dtype)
    out_pad, attn_pad = pl.pallas_call(
        kernel,
        out_shape=(
            jax.ShapeDtypeStruct((B, S_pad, D_pad), out_dtype),
            jax.ShapeDtypeStruct((B, S_pad, S_pad), attn_dtype),
        ),
        grid_spec=pltpu.PrefetchScalarGridSpec(
            num_scalar_prefetch=0,
            grid=(B, S_pad // TQ),
            in_specs=[
                pl.BlockSpec((1, TQ, D_pad), lambda b, q: (b, q, 0)),     # Q tile
                pl.BlockSpec((1, D_pad, S_pad), lambda b, q: (b, 0, 0)),  # K^T (per-batch resident)
                pl.BlockSpec((1, S_pad, D_pad), lambda b, q: (b, 0, 0)),  # V   (per-batch resident)
            ],
            out_specs=[
                pl.BlockSpec((1, TQ, D_pad), lambda b, q: (b, q, 0)),     # output
                pl.BlockSpec((1, TQ, S_pad), lambda b, q: (b, q, 0)),     # attn weights
            ],
        ),
        compiler_params=pltpu.CompilerParams(
            dimension_semantics=("parallel", "parallel"),
            vmem_limit_bytes=_vmem_limit_bytes(attn_est),
        ),
    )(q_proj, k_t, v_proj)

    # Slice padding off only when it was actually added, and only on the padded axes.
    out = out_pad if (S_pad == S and D_pad == D) else out_pad[:, :S, :D]
    attn = attn_pad if S_pad == S else attn_pad[:, :S, :S]
    return out, attn


def _ref_self_attention(x, wq, bq, wk, bk, wv, bv):
    q = x @ wq + bq
    k = x @ wk + bk
    v = x @ wv + bv
    d_k = q.shape[-1]
    scores = jnp.einsum("bsd,btd->bst", q, k) / math.sqrt(d_k)
    attn = jax.nn.softmax(scores, axis=-1)
    out = jnp.einsum("bst,btd->bsd", attn, v)
    return out, attn


if __name__ == "__main__":
    B, S, D = 2, 8, 32
    key = jax.random.PRNGKey(0)
    kx, kq, kbq, kk, kbk, kv, kbv = jax.random.split(key, 7)

    x = jax.random.normal(kx, (B, S, D), dtype=jnp.float32)

    # Deterministic parameter init (uniform like nn.Linear default range),
    # stored pre-transposed as (D_in, D_out).
    bound = 1.0 / math.sqrt(D)
    wq = jax.random.uniform(kq, (D, D), minval=-bound, maxval=bound, dtype=jnp.float32)
    wk = jax.random.uniform(kk, (D, D), minval=-bound, maxval=bound, dtype=jnp.float32)
    wv = jax.random.uniform(kv, (D, D), minval=-bound, maxval=bound, dtype=jnp.float32)
    bq = jax.random.uniform(kbq, (1, D), minval=-bound, maxval=bound, dtype=jnp.float32)
    bk = jax.random.uniform(kbk, (1, D), minval=-bound, maxval=bound, dtype=jnp.float32)
    bv = jax.random.uniform(kbv, (1, D), minval=-bound, maxval=bound, dtype=jnp.float32)

    ref_out, ref_attn = _ref_self_attention(x, wq, bq, wk, bk, wv, bv)

    # Exact-parity path: f32 MXU operands + Newton-corrected reciprocal.
    out, attn = self_attention(x, wq, bq, wk, bk, wv, bv, compute_dtype=jnp.float32)
    out = jax.block_until_ready(out)
    attn = jax.block_until_ready(attn)
    assert jnp.allclose(out, ref_out, atol=1e-4, rtol=1e-4), "f32 output mismatch"
    assert jnp.allclose(attn, ref_attn, atol=1e-4, rtol=1e-4), "f32 weights mismatch"

    # Default fast path: bf16 MXU operands, f32 accumulation / softmax.
    out_bf, attn_bf = self_attention(x, wq, bq, wk, bk, wv, bv)
    out_bf = jax.block_until_ready(out_bf)
    attn_bf = jax.block_until_ready(attn_bf)
    assert jnp.allclose(out_bf, ref_out, atol=1e-1, rtol=1e-1), "bf16 output mismatch"
    assert jnp.allclose(attn_bf, ref_attn, atol=1e-1, rtol=1e-1), "bf16 weights mismatch"

    print("KERNEL_OK")
</pallas_src>

<mosaic_0001>
module attributes {stable_mosaic.version = 11 : i64} {
  func.func @_qkv_proj_kernel(%arg0: i32, %arg1: i32, %arg2: memref<1x128x128xf32, #tpu.memory_space<vmem>>, %arg3: memref<128x384xf32, #tpu.memory_space<vmem>>, %arg4: memref<1x384xf32, #tpu.memory_space<vmem>>, %arg5: memref<1x128x128xf32, #tpu.memory_space<vmem>>, %arg6: memref<1x128x128xf32, #tpu.memory_space<vmem>>, %arg7: memref<1x128x128xf32, #tpu.memory_space<vmem>>) attributes {dimension_semantics = [#tpu.dimension_semantics<parallel>, #tpu.dimension_semantics<parallel>], iteration_bounds = array<i64: 2, 1>, scalar_prefetch = 0 : i64, scratch_operands = 0 : i64, tpu.core_type = #tpu.core_type<tc>, window_params = [{transform_indices = @transform_0, window_bounds = array<i64: 1, 128, 128>}, {pipeline_mode = #tpu.pipeline_mode<synchronous>, transform_indices = @transform_1, window_bounds = array<i64: 128, 384>}, {pipeline_mode = #tpu.pipeline_mode<synchronous>, transform_indices = @transform_2, window_bounds = array<i64: 1, 384>}, {transform_indices = @transform_3, window_bounds = array<i64: 1, 128, 128>}, {transform_indices = @transform_4, window_bounds = array<i64: 1, 128, 128>}, {transform_indices = @transform_5, window_bounds = array<i64: 1, 128, 128>}]} {
    %c0 = arith.constant 0 : index
    %c0_0 = arith.constant 0 : index
    %c0_1 = arith.constant 0 : index
    %0 = vector.load %arg2[%c0, %c0_0, %c0_1] : memref<1x128x128xf32, #tpu.memory_space<vmem>>, vector<1x128x128xf32>
    %1 = vector.shape_cast %0 : vector<1x128x128xf32> to vector<128x128xf32>
    %c0_2 = arith.constant 0 : index
    %c0_3 = arith.constant 0 : index
    %2 = vector.load %arg3[%c0_2, %c0_3] : memref<128x384xf32, #tpu.memory_space<vmem>>, vector<128x384xf32>
    %cst = arith.constant dense<0.000000e+00> : vector<128x384xf32>
    %3 = tpu.matmul %1, %2, %cst {dimension_numbers = #tpu.dot_dimension_numbers<[1], [0], [0], [1], [0, 0, 1, 1], [], []>} : vector<128x128xf32>, vector<128x384xf32>, vector<128x384xf32> -> vector<128x384xf32>
    %c0_4 = arith.constant 0 : index
    %c0_5 = arith.constant 0 : index
    %4 = vector.load %arg4[%c0_4, %c0_5] : memref<1x384xf32, #tpu.memory_space<vmem>>, vector<1x384xf32>
    %5 = vector.broadcast %4 : vector<1x384xf32> to vector<128x384xf32>
    %6 = arith.addf %3, %5 : vector<128x384xf32>
    %7 = vector.extract_strided_slice %6 {offsets = [0, 0], sizes = [128, 128], strides = [1, 1]} : vector<128x384xf32> to vector<128x128xf32>
    %c0_6 = arith.constant 0 : index
    %c0_7 = arith.constant 0 : index
    %c0_8 = arith.constant 0 : index
    %8 = vector.load %arg5[%c0_6, %c0_7, %c0_8] : memref<1x128x128xf32, #tpu.memory_space<vmem>>, vector<1x128x128xf32>
    %9 = vector.shape_cast %8 : vector<1x128x128xf32> to vector<128x128xf32>
    %10 = vector.shape_cast %7 : vector<128x128xf32> to vector<1x128x128xf32>
    tpu.vector_store %arg5[%c0_6, %c0_7, %c0_8], %10 {strides = array<i32>} : memref<1x128x128xf32, #tpu.memory_space<vmem>>, vector<1x128x128xf32>,
    %11 = vector.extract_strided_slice %6 {offsets = [0, 128], sizes = [128, 128], strides = [1, 1]} : vector<128x384xf32> to vector<128x128xf32>
    %12 = tpu.transpose %11, [1, 0] : vector<128x128xf32> -> vector<128x128xf32>
    %c0_9 = arith.constant 0 : index
    %c0_10 = arith.constant 0 : index
    %c0_11 = arith.constant 0 : index
    %13 = vector.load %arg6[%c0_9, %c0_10, %c0_11] : memref<1x128x128xf32, #tpu.memory_space<vmem>>, vector<1x128x128xf32>
    %14 = vector.shape_cast %13 : vector<1x128x128xf32> to vector<128x128xf32>
    %15 = vector.shape_cast %12 : vector<128x128xf32> to vector<1x128x128xf32>
    tpu.vector_store %arg6[%c0_9, %c0_10, %c0_11], %15 {strides = array<i32>} : memref<1x128x128xf32, #tpu.memory_space<vmem>>, vector<1x128x128xf32>,
    %16 = vector.extract_strided_slice %6 {offsets = [0, 256], sizes = [128, 128], strides = [1, 1]} : vector<128x384xf32> to vector<128x128xf32>
    %c0_12 = arith.constant 0 : index
    %c0_13 = arith.constant 0 : index
    %c0_14 = arith.constant 0 : index
    %17 = vector.load %arg7[%c0_12, %c0_13, %c0_14] : memref<1x128x128xf32, #tpu.memory_space<vmem>>, vector<1x128x128xf32>
    %18 = vector.shape_cast %17 : vector<1x128x128xf32> to vector<128x128xf32>
    %19 = vector.shape_cast %16 : vector<128x128xf32> to vector<1x128x128xf32>
    tpu.vector_store %arg7[%c0_12, %c0_13, %c0_14], %19 {strides = array<i32>} : memref<1x128x128xf32, #tpu.memory_space<vmem>>, vector<1x128x128xf32>,
    return
  }
  func.func @transform_0(%arg0: i32, %arg1: i32) -> (i32, i32, i32) {
    %c0_i32 = arith.constant 0 : i32
    %c0_i32_0 = arith.constant 0 : i32
    return %arg0, %arg1, %c0_i32 : i32, i32, i32
  }
  func.func @transform_1(%arg0: i32, %arg1: i32) -> (i32, i32) {
    %c0_i32 = arith.constant 0 : i32
    %c0_i32_0 = arith.constant 0 : i32
    %c0_i32_1 = arith.constant 0 : i32
    return %c0_i32, %c0_i32_0 : i32, i32
  }
  func.func @transform_2(%arg0: i32, %arg1: i32) -> (i32, i32) {
    %c0_i32 = arith.constant 0 : i32
    %c0_i32_0 = arith.constant 0 : i32
    %c0_i32_1 = arith.constant 0 : i32
    return %c0_i32, %c0_i32_0 : i32, i32
  }
  func.func @transform_3(%arg0: i32, %arg1: i32) -> (i32, i32, i32) {
    %c0_i32 = arith.constant 0 : i32
    %c0_i32_0 = arith.constant 0 : i32
    return %arg0, %arg1, %c0_i32 : i32, i32, i32
  }
  func.func @transform_4(%arg0: i32, %arg1: i32) -> (i32, i32, i32) {
    %c0_i32 = arith.constant 0 : i32
    %c0_i32_0 = arith.constant 0 : i32
    return %arg0, %c0_i32, %arg1 : i32, i32, i32
  }
  func.func @transform_5(%arg0: i32, %arg1: i32) -> (i32, i32, i32) {
    %c0_i32 = arith.constant 0 : i32
    %c0_i32_0 = arith.constant 0 : i32
    return %arg0, %arg1, %c0_i32 : i32, i32, i32
  }
}

</mosaic_0001>

<llo_original>
// kernel: tpu_custom_call.1
$region0: #{tpu_custom_call.1}
  #allocation0 [shape = 'u32[]', space=smem, size = 0x4, offset = 0x4, fixed_abs, tag = 'smem constant byte address 0x4 - core index']
  #allocation1 [shape = 'u32[144,128]{1,0:T(1,128)}', space=vmem, size = 0x12000, scoped, tag = 'internal scratch']
  %s0 = inlined_call_operand.hbm [shape: f32[2,128,128], index: 0, kind: input, shape index: {}]
  %s1 = inlined_call_operand.hbm [shape: f32[128,384], index: 1, kind: input, shape index: {}]
  %s2 = inlined_call_operand.vmem [shape: f32[1,384], index: 2, kind: input, shape index: {}]
  %s3 = inlined_call_operand.hbm [shape: f32[2,128,128], index: 3, kind: output, shape index: {0}]
  %s4 = inlined_call_operand.hbm [shape: f32[2,128,128], index: 4, kind: output, shape index: {1}]
  %s5 = inlined_call_operand.hbm [shape: f32[2,128,128], index: 5, kind: output, shape index: {2}]
  %6 = xla_tuple %s3, %s4, %s5
  %s7 = sld [smem:[#allocation0]]
  $region69: #{tpu_custom_call.1} parent=0
    _
  %s9 = ssub.s32 1, %s7
  %s10 = scalar_select 0, %s9, %s7
  $region1: #{tpu_custom_call.1} parent=0
    #allocation2 [shape = 'u8[131072]{0}', space=vmem, size = 0x20000, scoped, tag = 'input window, operand 0']
    #allocation3 [shape = 's32[2]{0}', space=sflag, size = 0x8, scoped, tag = 'scoped memory for tpu_custom_call.1']
    #allocation4 [shape = 's32[2]{0}', space=sflag, size = 0x8, scoped, tag = 'scoped memory for tpu_custom_call.1']
    #allocation5 [shape = 'u8[196608]{0}', space=vmem, size = 0x30000, scoped, tag = 'input window, operand 1, single buffered']
    #allocation6 [shape = 's32[1]{0}', space=sflag, size = 0x4, scoped, tag = 'scoped memory for tpu_custom_call.1']
    #allocation7 [shape = 'u8[131072]{0}', space=vmem, size = 0x20000, scoped, tag = 'output window, operand 0']
    #allocation8 [shape = 'u8[131072]{0}', space=vmem, size = 0x20000, scoped, tag = 'output window, operand 1']
    #allocation9 [shape = 's32[2]{0}', space=sflag, size = 0x8, scoped, tag = 'scoped memory for tpu_custom_call.1']
    #allocation10 [shape = 'u8[131072]{0}', space=vmem, size = 0x20000, scoped, tag = 'output window, operand 2']
    %11 = vsyncpa [#allocation3], 0
    %s12 = scalar_lea.sflag [#allocation3], 1
    %13 = vsyncpa %s12, 0
    %14 = vsyncpa [#allocation6], 0
    %15 = vsyncpa [#allocation4], 0
    %s16 = scalar_lea.sflag [#allocation4], 1
    %17 = vsyncpa %s16, 0
    %18 = vsyncpa [#allocation9], 0
    %s19 = scalar_lea.sflag [#allocation9], 1
    %20 = vsyncpa %s19, 0
    loop: start=0, step=1, limit=4
    $region2: #{tpu_custom_call.1} parent=1 // loop_pre_header
      _
    $region3: #{tpu_custom_call.1} parent=1 // loop_header
      %s22 = sphi 0, %s26
      %p23 = scmp.ge.s32.totalorder %s22, 4
      %s29 = sphi 0, %s41
      %s30 = sphi 0, %s37
      %s31 = sphi 0, %s29
      %s32 = sphi 0, %s30
      %s33 = sphi 0, %s31
      %s34 = sphi 0, %s32
      %s46 = sphi 0, %s48
      %s49 = sphi 0, %s46
      %s50 = sphi 0, %s49
      %s66 = sphi 0, %s50
      %s70 = sphi 0, %s70
      %s72 = sphi 0, %s70
      %s73 = sphi 0, %s72
      %s87 = sphi 0, %s73
      %s91 = sphi 0, %s91
      %s93 = sphi 0, %s91
      %s94 = sphi 0, %s93
      %s108 = sphi 0, %s94
      %s116 = sphi 0, %s118
      %s119 = sphi 0, %s116
      %s120 = sphi 0, %s119
      %s136 = sphi 0, %s120
      %s144 = sphi 0, %s146
      %s147 = sphi 0, %s144
      %s148 = sphi 0, %s147
      %s164 = sphi 0, %s148
      %s172 = sphi 0, %s174
      %s175 = sphi 0, %s172
      %s176 = sphi 0, %s175
      %s192 = sphi 0, %s176
    $region4: #{tpu_custom_call.1} parent=1 // loop_header_branch
      %25 = sbr.rel (%p23) target = $region8
    $region5: #{tpu_custom_call.1} parent=1 // loop_body
      %s27 = ssub.s32 %s22, 1
      %s28 = ssub.s32 %s22, 2
      %s35 = sadd.s32 1, %s30
      %p36 = scmp.ge.s32.totalorder %s35, 1
      %s37 = scalar_select %p36, 0, %s35
      %s38 = sadd.s32 1, %s29
      %s39 = scalar_select %p36, %s38, %s29
      %p40 = scmp.ge.s32.totalorder %s39, 2
      %s41 = scalar_select %p40, 0, %s39
      %s42 = ssub.s32 %s29, %s41
      %s43 = ssub.s32 %s30, %s37
      %s44 = sor.u32 %s42, %s43
      %p45 = scmp.eq.s32.totalorder %s44, 0
      %s47 = sadd.s32 %s46, 1
      %s48 = scalar_select %p45, %s46, %s47
      %p51 = pneg %p45
      %p52 = scmp.eq.s32.totalorder %s22, 1
      %p53 = por %p51, %p52
      %p54 = scmp.ne.s32.totalorder %s46, %s49
      %p55 = scmp.eq.s32.totalorder %s22, 0
      %p56 = por %p54, %p55
      %p57 = scmp.ne.s32.totalorder %s46, %s49
      %p58 = scmp.eq.s32.totalorder %s27, 1
      %p59 = por %p57, %p58
      %p60 = scmp.ne.s32.totalorder %s49, %s50
      %p61 = scmp.eq.s32.totalorder %s27, 0
      %p62 = por %p60, %p61
      %p63 = scmp.ne.s32.totalorder %s49, %s50
      %p64 = scmp.eq.s32.totalorder %s28, 1
      %p65 = por %p63, %p64
      %p67 = scmp.ne.s32.totalorder %s50, %s66
      %p68 = scmp.eq.s32.totalorder %s28, 0
      %p69 = por %p67, %p68
      %s71 = sadd.s32 %s70, 1
      %p74 = scmp.eq.s32.totalorder %s22, 1
      %p75 = scmp.ne.s32.totalorder %s70, %s72
      %p76 = scmp.eq.s32.totalorder %s22, 0
      %p77 = por %p75, %p76
      %p78 = scmp.ne.s32.totalorder %s70, %s72
      %p79 = scmp.eq.s32.totalorder %s27, 1
      %p80 = por %p78, %p79
      %p81 = scmp.ne.s32.totalorder %s72, %s73
      %p82 = scmp.eq.s32.totalorder %s27, 0
      %p83 = por %p81, %p82
      %p84 = scmp.ne.s32.totalorder %s72, %s73
      %p85 = scmp.eq.s32.totalorder %s28, 1
      %p86 = por %p84, %p85
      %p88 = scmp.ne.s32.totalorder %s73, %s87
      %p89 = scmp.eq.s32.totalorder %s28, 0
      %p90 = por %p88, %p89
      %s92 = sadd.s32 %s91, 1
      %p95 = scmp.eq.s32.totalorder %s22, 1
      %p96 = scmp.ne.s32.totalorder %s91, %s93
      %p97 = scmp.eq.s32.totalorder %s22, 0
      %p98 = por %p96, %p97
      %p99 = scmp.ne.s32.totalorder %s91, %s93
      %p100 = scmp.eq.s32.totalorder %s27, 1
      %p101 = por %p99, %p100
      %p102 = scmp.ne.s32.totalorder %s93, %s94
      %p103 = scmp.eq.s32.totalorder %s27, 0
      %p104 = por %p102, %p103
      %p105 = scmp.ne.s32.totalorder %s93, %s94
      %p106 = scmp.eq.s32.totalorder %s28, 1
      %p107 = por %p105, %p106
      %p109 = scmp.ne.s32.totalorder %s94, %s108
      %p110 = scmp.eq.s32.totalorder %s28, 0
      %p111 = por %p109, %p110
      %s112 = ssub.s32 %s29, %s41
      %s113 = ssub.s32 %s30, %s37
      %s114 = sor.u32 %s112, %s113
      %p115 = scmp.eq.s32.totalorder %s114, 0
      %s117 = sadd.s32 %s116, 1
      %s118 = scalar_select %p115, %s116, %s117
      %p121 = pneg %p115
      %p122 = scmp.eq.s32.totalorder %s22, 1
      %p123 = por %p121, %p122
      %p124 = scmp.ne.s32.totalorder %s116, %s119
      %p125 = scmp.eq.s32.totalorder %s22, 0
      %p126 = por %p124, %p125
      %p127 = scmp.ne.s32.totalorder %s116, %s119
      %p128 = scmp.eq.s32.totalorder %s27, 1
      %p129 = por %p127, %p128
      %p130 = scmp.ne.s32.totalorder %s119, %s120
      %p131 = scmp.eq.s32.totalorder %s27, 0
      %p132 = por %p130, %p131
      %p133 = scmp.ne.s32.totalorder %s119, %s120
      %p134 = scmp.eq.s32.totalorder %s28, 1
      %p135 = por %p133, %p134
      %p137 = scmp.ne.s32.totalorder %s120, %s136
      %p138 = scmp.eq.s32.totalorder %s28, 0
      %p139 = por %p137, %p138
      %s140 = ssub.s32 %s29, %s41
      %s141 = ssub.s32 %s30, %s37
      %s142 = sor.u32 %s140, %s141
      %p143 = scmp.eq.s32.totalorder %s142, 0
      %s145 = sadd.s32 %s144, 1
      %s146 = scalar_select %p143, %s144, %s145
      %p149 = pneg %p143
      %p150 = scmp.eq.s32.totalorder %s22, 1
      %p151 = por %p149, %p150
      %p152 = scmp.ne.s32.totalorder %s144, %s147
      %p153 = scmp.eq.s32.totalorder %s22, 0
      %p154 = por %p152, %p153
      %p155 = scmp.ne.s32.totalorder %s144, %s147
      %p156 = scmp.eq.s32.totalorder %s27, 1
      %p157 = por %p155, %p156
      %p158 = scmp.ne.s32.totalorder %s147, %s148
      %p159 = scmp.eq.s32.totalorder %s27, 0
      %p160 = por %p158, %p159
      %p161 = scmp.ne.s32.totalorder %s147, %s148
      %p162 = scmp.eq.s32.totalorder %s28, 1
      %p163 = por %p161, %p162
      %p165 = scmp.ne.s32.totalorder %s148, %s164
      %p166 = scmp.eq.s32.totalorder %s28, 0
      %p167 = por %p165, %p166
      %s168 = ssub.s32 %s29, %s41
      %s169 = ssub.s32 %s30, %s37
      %s170 = sor.u32 %s168, %s169
      %p171 = scmp.eq.s32.totalorder %s170, 0
      %s173 = sadd.s32 %s172, 1
      %s174 = scalar_select %p171, %s172, %s173
      %p177 = pneg %p171
      %p178 = scmp.eq.s32.totalorder %s22, 1
      %p179 = por %p177, %p178
      %p180 = scmp.ne.s32.totalorder %s172, %s175
      %p181 = scmp.eq.s32.totalorder %s22, 0
      %p182 = por %p180, %p181
      %p183 = scmp.ne.s32.totalorder %s172, %s175
      %p184 = scmp.eq.s32.totalorder %s27, 1
      %p185 = por %p183, %p184
      %p186 = scmp.ne.s32.totalorder %s175, %s176
      %p187 = scmp.eq.s32.totalorder %s27, 0
      %p188 = por %p186, %p187
      %p189 = scmp.ne.s32.totalorder %s175, %s176
      %p190 = scmp.eq.s32.totalorder %s28, 1
      %p191 = por %p189, %p190
      %p193 = scmp.ne.s32.totalorder %s176, %s192
      %p194 = scmp.eq.s32.totalorder %s28, 0
      %p195 = por %p193, %p194
      %p196 = scmp.le.s32.totalorder 1, %s22
      %p197 = scmp.lt.s32.totalorder %s22, 3
      %p198 = pnand %p196, %p197
      %p199 = pneg %p198
      // Predicated region
      $region9: #{tpu_custom_call.1} parent=5 // pred_check
        _
      $region10: #{tpu_custom_call.1} parent=5 // pred_check_branch
        %201 = sbr.rel (%p198) target = $region12
      $region11: #{tpu_custom_call.1} parent=5 // pred_region
        %s202 = ssub.s32 %s22, 1
        // Predicated region
        $region13: #{tpu_custom_call.1} parent=11 // pred_check
          %p203 = pneg %p83
        $region14: #{tpu_custom_call.1} parent=11 // pred_check_branch
          %205 = sbr.rel (%p203) target = $region16
        $region15: #{tpu_custom_call.1} parent=11 // pred_region
          %s207 = ssub.s32 6144, 6144
          %208 = vsyncadd [#allocation6], %s207
          %s209 = sshll.u32 [#allocation5], 4
          %s210 = int_to_ptr.vmem [resolvable:$true] %s209
          %215 = dma.hbm_to_vmem [thread:$0]  %s1, 6144, %s210, [#allocation6], 384, 384, 24
        $region16: #{tpu_custom_call.1} parent=11 // pred_fallthru
          _
        // Predicated region
        $region17: #{tpu_custom_call.1} parent=11 // pred_check
          %p216 = pneg %p104
        $region18: #{tpu_custom_call.1} parent=11 // pred_check_branch
          %218 = sbr.rel (%p216) target = $region20
        $region19: #{tpu_custom_call.1} parent=11 // pred_region
          _
        $region20: #{tpu_custom_call.1} parent=11 // pred_fallthru
          _
      $region12: #{tpu_custom_call.1} parent=5 // pred_fallthru
        _
      %p219 = scmp.lt.s32.totalorder %s22, 2
      // Predicated region
      $region21: #{tpu_custom_call.1} parent=5 // pred_check
        %p220 = pneg %p219
      $region22: #{tpu_custom_call.1} parent=5 // pred_check_branch
        %222 = sbr.rel (%p220) target = $region24
      $region23: #{tpu_custom_call.1} parent=5 // pred_region
        // Predicated region
        $region25: #{tpu_custom_call.1} parent=23 // pred_check
          %p223 = pneg %p56
        $region26: #{tpu_custom_call.1} parent=23 // pred_check_branch
          %225 = sbr.rel (%p223) target = $region28
        $region27: #{tpu_custom_call.1} parent=23 // pred_region
          %s226 = sand.u32 %s46, 1
          %s227 = scalar_lea.sflag [#allocation3], %s226
          %s228 = sand.u32 %s46, 1
          %s229 = smul.addr %s228, 128
          %s230 = scalar_lea.vmem [#allocation2], %s229
          %s231 = smul.u32 16, %s30
          %s233 = ssub.s32 2048, 2048
          %234 = vsyncadd %s227, %s233
          %s235 = smul.addr %s29, 16
          %s236 = sadd.s32 %s231, %s235
          %s237 = smul.addr %s236, 128
          %s238 = scalar_lea.hbm %s0, %s237
          %s239 = sshll.u32 %s230, 4
          %s240 = int_to_ptr.vmem [resolvable:$true] %s239
          %245 = dma.hbm_to_vmem [thread:$0]  %s238, 2048, %s240, %s227, 128, 128, 8
        $region28: #{tpu_custom_call.1} parent=23 // pred_fallthru
          _
      $region24: #{tpu_custom_call.1} parent=5 // pred_fallthru
        _
      %p246 = scmp.le.s32.totalorder 1, %s22
      %p247 = scmp.lt.s32.totalorder %s22, 3
      %p248 = pnand %p246, %p247
      %p249 = pneg %p248
      // Predicated region
      $region29: #{tpu_custom_call.1} parent=5 // pred_check
        _
      $region30: #{tpu_custom_call.1} parent=5 // pred_check_branch
        %251 = sbr.rel (%p248) target = $region32
      $region31: #{tpu_custom_call.1} parent=5 // pred_region
        %s252 = ssub.s32 %s22, 1
        %s253 = sand.u32 %s49, 1
        %s254 = scalar_lea.sflag [#allocation3], %s253
        %s255 = sand.u32 %s49, 1
        %s256 = smul.addr %s255, 128
        %s257 = scalar_lea.vmem [#allocation2], %s256
        // Predicated region
        $region33: #{tpu_custom_call.1} parent=31 // pred_check
          %p258 = pneg %p62
        $region34: #{tpu_custom_call.1} parent=31 // pred_check_branch
          %260 = sbr.rel (%p258) target = $region36
        $region35: #{tpu_custom_call.1} parent=31 // pred_region
          %261 = dma.done %s254, 2048
        $region36: #{tpu_custom_call.1} parent=31 // pred_fallthru
          _
        // Predicated region
        $region37: #{tpu_custom_call.1} parent=31 // pred_check
          %p262 = pneg %p83
        $region38: #{tpu_custom_call.1} parent=31 // pred_check_branch
          %264 = sbr.rel (%p262) target = $region40
        $region39: #{tpu_custom_call.1} parent=31 // pred_region
          %265 = dma.done [#allocation6], 6144
        $region40: #{tpu_custom_call.1} parent=31 // pred_fallthru
          _
        %s266 = sand.u32 %s49, 1
        %s267 = scalar_lea.sflag [#allocation3], %s266
        %s268 = sand.u32 %s49, 1
        %s269 = smul.addr %s268, 128
        %s270 = scalar_lea.vmem [#allocation2], %s269
        %p271 = pneg %p62
        %p272 = pneg %p59
        %p273 = pneg %p83
        %p274 = pneg %p80
        %p275 = pneg %p104
        %p276 = pneg %p101
        %p277 = pneg %p132
        %p278 = pneg %p129
        %s279 = sand.u32 %s119, 1
        %s280 = scalar_lea.sflag [#allocation4], %s279
        %s281 = sand.u32 %s119, 1
        %s282 = smul.addr %s281, 128
        %s283 = scalar_lea.vmem [#allocation7], %s282
        %p284 = pneg %p160
        %p285 = pneg %p157
        %s286 = sand.u32 %s27, 1
        %s287 = scalar_lea.sflag [#allocation9], %s286
        %s288 = sand.u32 %s147, 1
        %s289 = smul.addr %s288, 128
        %s290 = scalar_lea.vmem [#allocation8], %s289
        %p291 = pneg %p188
        %p292 = pneg %p185
        %s293 = sand.u32 %s27, 1
        %s294 = scalar_lea.sflag [#allocation9], %s293
        %s295 = sand.u32 %s175, 1
        %s296 = smul.addr %s295, 128
        %s297 = scalar_lea.vmem [#allocation10], %s296
        %s298 = smul.u32 16, %s32
        %s299 = smul.u32 16, %s32
        %s300 = smul.u32 16, %s32
        %v301 = vld [vmem:[%s257] sm:$0xff]
        %v302 = vld [vmem:[%s257 + $0x8] sm:$0xff]
        %v303 = vld [vmem:[%s257 + $0x10] sm:$0xff]
        %v304 = vld [vmem:[%s257 + $0x18] sm:$0xff]
        %v305 = vld [vmem:[%s257 + $0x20] sm:$0xff]
        %v306 = vld [vmem:[%s257 + $0x28] sm:$0xff]
        %v307 = vld [vmem:[%s257 + $0x30] sm:$0xff]
        %v308 = vld [vmem:[%s257 + $0x38] sm:$0xff]
        %v309 = vld [vmem:[%s257 + $0x40] sm:$0xff]
        %v310 = vld [vmem:[%s257 + $0x48] sm:$0xff]
        %v311 = vld [vmem:[%s257 + $0x50] sm:$0xff]
        %v312 = vld [vmem:[%s257 + $0x58] sm:$0xff]
        %v313 = vld [vmem:[%s257 + $0x60] sm:$0xff]
        %v314 = vld [vmem:[%s257 + $0x68] sm:$0xff]
        %v315 = vld [vmem:[%s257 + $0x70] sm:$0xff]
        %v316 = vld [vmem:[%s257 + $0x78] sm:$0xff]
        %v317 = vld [vmem:[#allocation5] sm:$0xff]
        %v318 = vld [vmem:[#allocation5 + $0x8] sm:$0xff]
        %v319 = vld [vmem:[#allocation5 + $0x10] sm:$0xff]
        %v320 = vld [vmem:[#allocation5 + $0x18] sm:$0xff]
        %v321 = vld [vmem:[#allocation5 + $0x20] sm:$0xff]
        %v322 = vld [vmem:[#allocation5 + $0x28] sm:$0xff]
        %v323 = vld [vmem:[#allocation5 + $0x30] sm:$0xff]
        %v324 = vld [vmem:[#allocation5 + $0x38] sm:$0xff]
        %v325 = vld [vmem:[#allocation5 + $0x40] sm:$0xff]
        %v326 = vld [vmem:[#allocation5 + $0x48] sm:$0xff]
        %v327 = vld [vmem:[#allocation5 + $0x50] sm:$0xff]
        %v328 = vld [vmem:[#allocation5 + $0x58] sm:$0xff]
        %v329 = vld [vmem:[#allocation5 + $0x60] sm:$0xff]
        %v330 = vld [vmem:[#allocation5 + $0x68] sm:$0xff]
        %v331 = vld [vmem:[#allocation5 + $0x70] sm:$0xff]
        %v332 = vld [vmem:[#allocation5 + $0x78] sm:$0xff]
        %v333 = vld [vmem:[#allocation5 + $0x80] sm:$0xff]
        %v334 = vld [vmem:[#allocation5 + $0x88] sm:$0xff]
        %v335 = vld [vmem:[#allocation5 + $0x90] sm:$0xff]
        %v336 = vld [vmem:[#allocation5 + $0x98] sm:$0xff]
        %v337 = vld [vmem:[#allocation5 + $0xa0] sm:$0xff]
        %v338 = vld [vmem:[#allocation5 + $0xa8] sm:$0xff]
        %v339 = vld [vmem:[#allocation5 + $0xb0] sm:$0xff]
        %v340 = vld [vmem:[#allocation5 + $0xb8] sm:$0xff]
        %v341 = vld [vmem:[#allocation5 + $0xc0] sm:$0xff]
        %v342 = vld [vmem:[#allocation5 + $0xc8] sm:$0xff]
        %v343 = vld [vmem:[#allocation5 + $0xd0] sm:$0xff]
        %v344 = vld [vmem:[#allocation5 + $0xd8] sm:$0xff]
        %v345 = vld [vmem:[#allocation5 + $0xe0] sm:$0xff]
        %v346 = vld [vmem:[#allocation5 + $0xe8] sm:$0xff]
        %v347 = vld [vmem:[#allocation5 + $0xf0] sm:$0xff]
        %v348 = vld [vmem:[#allocation5 + $0xf8] sm:$0xff]
        %v349 = vld [vmem:[#allocation5 + $0x100] sm:$0xff]
        %v350 = vld [vmem:[#allocation5 + $0x108] sm:$0xff]
        %v351 = vld [vmem:[#allocation5 + $0x110] sm:$0xff]
        %v352 = vld [vmem:[#allocation5 + $0x118] sm:$0xff]
        %v353 = vld [vmem:[#allocation5 + $0x120] sm:$0xff]
        %v354 = vld [vmem:[#allocation5 + $0x128] sm:$0xff]
        %v355 = vld [vmem:[#allocation5 + $0x130] sm:$0xff]
        %v356 = vld [vmem:[#allocation5 + $0x138] sm:$0xff]
        %v357 = vld [vmem:[#allocation5 + $0x140] sm:$0xff]
        %v358 = vld [vmem:[#allocation5 + $0x148] sm:$0xff]
        %v359 = vld [vmem:[#allocation5 + $0x150] sm:$0xff]
        %v360 = vld [vmem:[#allocation5 + $0x158] sm:$0xff]
        %v361 = vld [vmem:[#allocation5 + $0x160] sm:$0xff]
        %v362 = vld [vmem:[#allocation5 + $0x168] sm:$0xff]
        %v363 = vld [vmem:[#allocation5 + $0x170] sm:$0xff]
        %v364 = vld [vmem:[#allocation5 + $0x178] sm:$0xff]
        %v365 = vld [vmem:[%s2] sm:$0x7]
        %v367 = vlaneseq
        %v368 = vshrl.u32 %v367, 7
        %v369 = vsub.s32 0, %v368
        %v370 = vrot.slane %v365, %v369
        %v371 = vlaneseq
        %v372 = vshrl.u32 %v371, 7
        %v373 = vsub.s32 1, %v372
        %v374 = vrot.slane %v365, %v373
        %v375 = vlaneseq
        %v376 = vshrl.u32 %v375, 7
        %v377 = vsub.s32 2, %v376
        %v378 = vrot.slane %v365, %v377
        %382 = vmatprep.subr.mxu0 %v363
        %383 = vmatpush1.msra.mxu0 %v362
        %384 = vmatprep.subr.mxu0 %v360
        %385 = vmatpush1.msra.mxu0 %v359
        %386 = vmatprep.subr.mxu0 %v357
        %387 = vmatpush1.msra.mxu0 %v356
        %388 = vmatprep.subr.mxu0 %v354
        %389 = vmatpush1.msra.mxu0 %v353
        %390 = vmatprep.subr.mxu0 %v351
        %391 = vmatpush1.msra.mxu0 %v350
        %392 = vmatprep.subr.mxu0 %v348
        %393 = vmatpush1.msra.mxu0 %v347
        %394 = vmatprep.subr.mxu0 %v345
        %395 = vmatpush1.msra.mxu0 %v344
        %396 = vmatprep.subr.mxu0 %v342
        %397 = vmatpush1.msra.mxu0 %v341
        %398 = vmatprep.subr.mxu0 %v339
        %399 = vmatpush1.msra.mxu0 %v338
        %400 = vmatprep.subr.mxu0 %v336
        %401 = vmatpush1.msra.mxu0 %v335
        %402 = vmatprep.subr.mxu0 %v333
        %403 = vmatpush1.msra.mxu0 %v332
        %404 = vmatprep.subr.mxu0 %v330
        %405 = vmatpush1.msra.mxu0 %v329
        %406 = vmatprep.subr.mxu0 %v327
        %407 = vmatpush1.msra.mxu0 %v326
        %408 = vmatprep.subr.mxu0 %v324
        %409 = vmatpush1.msra.mxu0 %v323
        %410 = vmatprep.subr.mxu0 %v321
        %411 = vmatpush1.msra.mxu0 %v320
        %412 = vmatprep.subr.mxu0 %v318
        %413 = vmatpush1.msra.mxu0 %v317
        %414 = vmatprep.subr.mxu0 0.0
        %415 = vmatpush2.msra.mxu0 0.0
        %416 = vmatprep.subr.mxu0 0.0
        %417 = vmatpush2.msra.mxu0 0.0
        %418 = vmatprep.subr.mxu0 0.0
        %419 = vmatpush2.msra.mxu0 0.0
        %420 = vmatprep.subr.mxu0 0.0
        %421 = vmatpush2.msra.mxu0 0.0
        %422 = vmatprep.subr.mxu0 0.0
        %423 = vmatpush2.msra.mxu0 0.0
        %424 = vmatprep.subr.mxu0 0.0
        %425 = vmatpush2.msra.mxu0 0.0
        %426 = vmatprep.subr.mxu0 0.0
        %427 = vmatpush2.msra.mxu0 0.0
        %428 = vmatprep.subr.mxu0 0.0
        %429 = vmatpush2.msra.mxu0 0.0
        %430 = vmatprep.subr.mxu0 0.0
        %431 = vmatpush2.msra.mxu0 0.0
        %432 = vmatprep.subr.mxu0 0.0
        %433 = vmatpush2.msra.mxu0 0.0
        %434 = vmatprep.subr.mxu0 0.0
        %435 = vmatpush2.msra.mxu0 0.0
        %436 = vmatprep.subr.mxu0 0.0
        %437 = vmatpush2.msra.mxu0 0.0
        %438 = vmatprep.subr.mxu0 0.0
        %439 = vmatpush2.msra.mxu0 0.0
        %440 = vmatprep.subr.mxu0 0.0
        %441 = vmatpush2.msra.mxu0 0.0
        %442 = vmatprep.subr.mxu0 0.0
        %443 = vmatpush2.msra.mxu0 0.0
        %444 = vmatprep.subr.mxu0 0.0
        %445 = vmatpush2.msra.mxu0 0.0
        %446 = vmatprep.mubr.f32.mxu0 0.0
        %447 = vmatmul.mubr.f32.gmra.mxu0 %v301
        %v448 = vpop.f32.mrf.mxu0
        %v449 = vadd.f32 %v370, %v448
        %v450 = vpop.f32.mrf.mxu0
        %v451 = vadd.f32 %v374, %v450
        %452 = vmatprep.mubr.f32.mxu0 0.0
        %453 = vmatmul.mubr.f32.gmra.mxu0 %v302
        %v454 = vpop.f32.mrf.mxu0
        %v455 = vadd.f32 %v370, %v454
        %v456 = vpop.f32.mrf.mxu0
        %v457 = vadd.f32 %v374, %v456
        %458 = vmatprep.mubr.f32.mxu0 0.0
        %459 = vmatmul.mubr.f32.gmra.mxu0 %v303
        %v460 = vpop.f32.mrf.mxu0
        %v461 = vadd.f32 %v370, %v460
        %v462 = vpop.f32.mrf.mxu0
        %v463 = vadd.f32 %v374, %v462
        %464 = vmatprep.mubr.f32.mxu0 0.0
        %465 = vmatmul.mubr.f32.gmra.mxu0 %v304
        %v466 = vpop.f32.mrf.mxu0
        %v467 = vadd.f32 %v370, %v466
        %v468 = vpop.f32.mrf.mxu0
        %v469 = vadd.f32 %v374, %v468
        %470 = vmatprep.mubr.f32.mxu0 0.0
        %471 = vmatmul.mubr.f32.gmra.mxu0 %v305
        %v472 = vpop.f32.mrf.mxu0
        %v473 = vadd.f32 %v370, %v472
        %v474 = vpop.f32.mrf.mxu0
        %v475 = vadd.f32 %v374, %v474
        %476 = vmatprep.mubr.f32.mxu0 0.0
        %477 = vmatmul.mubr.f32.gmra.mxu0 %v306
        %v478 = vpop.f32.mrf.mxu0
        %v479 = vadd.f32 %v370, %v478
        %v480 = vpop.f32.mrf.mxu0
        %v481 = vadd.f32 %v374, %v480
        %482 = vmatprep.mubr.f32.mxu0 0.0
        %483 = vmatmul.mubr.f32.gmra.mxu0 %v307
        %v484 = vpop.f32.mrf.mxu0
        %v485 = vadd.f32 %v370, %v484
        %v486 = vpop.f32.mrf.mxu0
        %v487 = vadd.f32 %v374, %v486
        %488 = vmatprep.mubr.f32.mxu0 0.0
        %489 = vmatmul.mubr.f32.gmra.mxu0 %v308
        %v490 = vpop.f32.mrf.mxu0
        %v491 = vadd.f32 %v370, %v490
        %v492 = vpop.f32.mrf.mxu0
        %v493 = vadd.f32 %v374, %v492
        %494 = vmatprep.mubr.f32.mxu0 0.0
        %495 = vmatmul.mubr.f32.gmra.mxu0 %v309
        %v496 = vpop.f32.mrf.mxu0
        %v497 = vadd.f32 %v370, %v496
        %v498 = vpop.f32.mrf.mxu0
        %v499 = vadd.f32 %v374, %v498
        %500 = vmatprep.mubr.f32.mxu0 0.0
        %501 = vmatmul.mubr.f32.gmra.mxu0 %v310
        %v502 = vpop.f32.mrf.mxu0
        %v503 = vadd.f32 %v370, %v502
        %v504 = vpop.f32.mrf.mxu0
        %v505 = vadd.f32 %v374, %v504
        %506 = vmatprep.mubr.f32.mxu0 0.0
        %507 = vmatmul.mubr.f32.gmra.mxu0 %v311
        %v508 = vpop.f32.mrf.mxu0
        %v509 = vadd.f32 %v370, %v508
        %v510 = vpop.f32.mrf.mxu0
        %v511 = vadd.f32 %v374, %v510
        %512 = vmatprep.mubr.f32.mxu0 0.0
        %513 = vmatmul.mubr.f32.gmra.mxu0 %v312
        %v514 = vpop.f32.mrf.mxu0
        %v515 = vadd.f32 %v370, %v514
        %v516 = vpop.f32.mrf.mxu0
        %v517 = vadd.f32 %v374, %v516
        %518 = vmatprep.mubr.f32.mxu0 0.0
        %519 = vmatmul.mubr.f32.gmra.mxu0 %v313
        %v520 = vpop.f32.mrf.mxu0
        %v521 = vadd.f32 %v370, %v520
        %v522 = vpop.f32.mrf.mxu0
        %v523 = vadd.f32 %v374, %v522
        %524 = vmatprep.mubr.f32.mxu0 0.0
        %525 = vmatmul.mubr.f32.gmra.mxu0 %v314
        %v526 = vpop.f32.mrf.mxu0
        %v527 = vadd.f32 %v370, %v526
        %v528 = vpop.f32.mrf.mxu0
        %v529 = vadd.f32 %v374, %v528
        %530 = vmatprep.mubr.f32.mxu0 0.0
        %531 = vmatmul.mubr.f32.gmra.mxu0 %v315
        %v532 = vpop.f32.mrf.mxu0
        %v533 = vadd.f32 %v370, %v532
        %v534 = vpop.f32.mrf.mxu0
        %v535 = vadd.f32 %v374, %v534
        %536 = vmatprep.mubr.f32.mxu0 0.0
        %537 = vmatmul.mubr.f32.gmra.mxu0 %v316
        %v538 = vpop.f32.mrf.mxu0
        %v539 = vadd.f32 %v370, %v538
        %v540 = vpop.f32.mrf.mxu0
        %v541 = vadd.f32 %v374, %v540
        %542 = vdwg.mxu0
        %543 = vmatprep.subr.mxu0 0.0
        %544 = vmatpush1.msra.mxu0 %v364
        %545 = vmatprep.subr.mxu0 0.0
        %546 = vmatpush1.msra.mxu0 %v361
        %547 = vmatprep.subr.mxu0 0.0
        %548 = vmatpush1.msra.mxu0 %v358
        %549 = vmatprep.subr.mxu0 0.0
        %550 = vmatpush1.msra.mxu0 %v355
        %551 = vmatprep.subr.mxu0 0.0
        %552 = vmatpush1.msra.mxu0 %v352
        %553 = vmatprep.subr.mxu0 0.0
        %554 = vmatpush1.msra.mxu0 %v349
        %555 = vmatprep.subr.mxu0 0.0
        %556 = vmatpush1.msra.mxu0 %v346
        %557 = vmatprep.subr.mxu0 0.0
        %558 = vmatpush1.msra.mxu0 %v343
        %559 = vmatprep.subr.mxu0 0.0
        %560 = vmatpush1.msra.mxu0 %v340
        %561 = vmatprep.subr.mxu0 0.0
        %562 = vmatpush1.msra.mxu0 %v337
        %563 = vmatprep.subr.mxu0 0.0
        %564 = vmatpush1.msra.mxu0 %v334
        %565 = vmatprep.subr.mxu0 0.0
        %566 = vmatpush1.msra.mxu0 %v331
        %567 = vmatprep.subr.mxu0 0.0
        %568 = vmatpush1.msra.mxu0 %v328
        %569 = vmatprep.subr.mxu0 0.0
        %570 = vmatpush1.msra.mxu0 %v325
        %571 = vmatprep.subr.mxu0 0.0
        %572 = vmatpush1.msra.mxu0 %v322
        %573 = vmatprep.subr.mxu0 0.0
        %574 = vmatpush1.msra.mxu0 %v319
        %575 = vmatprep.subr.mxu0 0.0
        %576 = vmatpush2.msra.mxu0 0.0
        %577 = vmatprep.subr.mxu0 0.0
        %578 = vmatpush2.msra.mxu0 0.0
        %579 = vmatprep.subr.mxu0 0.0
        %580 = vmatpush2.msra.mxu0 0.0
        %581 = vmatprep.subr.mxu0 0.0
        %582 = vmatpush2.msra.mxu0 0.0
        %583 = vmatprep.subr.mxu0 0.0
        %584 = vmatpush2.msra.mxu0 0.0
        %585 = vmatprep.subr.mxu0 0.0
        %586 = vmatpush2.msra.mxu0 0.0
        %587 = vmatprep.subr.mxu0 0.0
        %588 = vmatpush2.msra.mxu0 0.0
        %589 = vmatprep.subr.mxu0 0.0
        %590 = vmatpush2.msra.mxu0 0.0
        %591 = vmatprep.subr.mxu0 0.0
        %592 = vmatpush2.msra.mxu0 0.0
        %593 = vmatprep.subr.mxu0 0.0
        %594 = vmatpush2.msra.mxu0 0.0
        %595 = vmatprep.subr.mxu0 0.0
        %596 = vmatpush2.msra.mxu0 0.0
        %597 = vmatprep.subr.mxu0 0.0
        %598 = vmatpush2.msra.mxu0 0.0
        %599 = vmatprep.subr.mxu0 0.0
        %600 = vmatpush2.msra.mxu0 0.0
        %601 = vmatprep.subr.mxu0 0.0
        %602 = vmatpush2.msra.mxu0 0.0
        %603 = vmatprep.subr.mxu0 0.0
        %604 = vmatpush2.msra.mxu0 0.0
        %605 = vmatprep.subr.mxu0 0.0
        %606 = vmatpush2.msra.mxu0 0.0
        %607 = vmatprep.mubr.f32.mxu0 0.0
        %608 = vmatmul.mubr.f32.gmra.mxu0 %v301
        %v609 = vpop.f32.mrf.mxu0
        %v610 = vadd.f32 %v378, %v609
        %v611 = vpop.f32.mrf.mxu0
        %612 = vmatprep.mubr.f32.mxu0 0.0
        %613 = vmatmul.mubr.f32.gmra.mxu0 %v302
        %v614 = vpop.f32.mrf.mxu0
        %v615 = vadd.f32 %v378, %v614
        %v616 = vpop.f32.mrf.mxu0
        %617 = vmatprep.mubr.f32.mxu0 0.0
        %618 = vmatmul.mubr.f32.gmra.mxu0 %v303
        %v619 = vpop.f32.mrf.mxu0
        %v620 = vadd.f32 %v378, %v619
        %v621 = vpop.f32.mrf.mxu0
        %622 = vmatprep.mubr.f32.mxu0 0.0
        %623 = vmatmul.mubr.f32.gmra.mxu0 %v304
        %v624 = vpop.f32.mrf.mxu0
        %v625 = vadd.f32 %v378, %v624
        %v626 = vpop.f32.mrf.mxu0
        %627 = vmatprep.mubr.f32.mxu0 0.0
        %628 = vmatmul.mubr.f32.gmra.mxu0 %v305
        %v629 = vpop.f32.mrf.mxu0
        %v630 = vadd.f32 %v378, %v629
        %v631 = vpop.f32.mrf.mxu0
        %632 = vmatprep.mubr.f32.mxu0 0.0
        %633 = vmatmul.mubr.f32.gmra.mxu0 %v306
        %v634 = vpop.f32.mrf.mxu0
        %v635 = vadd.f32 %v378, %v634
        %v636 = vpop.f32.mrf.mxu0
        %637 = vmatprep.mubr.f32.mxu0 0.0
        %638 = vmatmul.mubr.f32.gmra.mxu0 %v307
        %v639 = vpop.f32.mrf.mxu0
        %v640 = vadd.f32 %v378, %v639
        %v641 = vpop.f32.mrf.mxu0
        %642 = vmatprep.mubr.f32.mxu0 0.0
        %643 = vmatmul.mubr.f32.gmra.mxu0 %v308
        %v644 = vpop.f32.mrf.mxu0
        %v645 = vadd.f32 %v378, %v644
        %v646 = vpop.f32.mrf.mxu0
        %647 = vmatprep.mubr.f32.mxu0 0.0
        %648 = vmatmul.mubr.f32.gmra.mxu0 %v309
        %v649 = vpop.f32.mrf.mxu0
        %v650 = vadd.f32 %v378, %v649
        %v651 = vpop.f32.mrf.mxu0
        %652 = vmatprep.mubr.f32.mxu0 0.0
        %653 = vmatmul.mubr.f32.gmra.mxu0 %v310
        %v654 = vpop.f32.mrf.mxu0
        %v655 = vadd.f32 %v378, %v654
        %v656 = vpop.f32.mrf.mxu0
        %657 = vmatprep.mubr.f32.mxu0 0.0
        %658 = vmatmul.mubr.f32.gmra.mxu0 %v311
        %v659 = vpop.f32.mrf.mxu0
        %v660 = vadd.f32 %v378, %v659
        %v661 = vpop.f32.mrf.mxu0
        %662 = vmatprep.mubr.f32.mxu0 0.0
        %663 = vmatmul.mubr.f32.gmra.mxu0 %v312
        %v664 = vpop.f32.mrf.mxu0
        %v665 = vadd.f32 %v378, %v664
        %v666 = vpop.f32.mrf.mxu0
        %667 = vmatprep.mubr.f32.mxu0 0.0
        %668 = vmatmul.mubr.f32.gmra.mxu0 %v313
        %v669 = vpop.f32.mrf.mxu0
        %v670 = vadd.f32 %v378, %v669
        %v671 = vpop.f32.mrf.mxu0
        %672 = vmatprep.mubr.f32.mxu0 0.0
        %673 = vmatmul.mubr.f32.gmra.mxu0 %v314
        %v674 = vpop.f32.mrf.mxu0
        %v675 = vadd.f32 %v378, %v674
        %v676 = vpop.f32.mrf.mxu0
        %677 = vmatprep.mubr.f32.mxu0 0.0
        %678 = vmatmul.mubr.f32.gmra.mxu0 %v315
        %v679 = vpop.f32.mrf.mxu0
        %v680 = vadd.f32 %v378, %v679
        %v681 = vpop.f32.mrf.mxu0
        %682 = vmatprep.mubr.f32.mxu0 0.0
        %683 = vmatmul.mubr.f32.gmra.mxu0 %v316
        %v684 = vpop.f32.mrf.mxu0
        %v685 = vadd.f32 %v378, %v684
        %v686 = vpop.f32.mrf.mxu0
        %687 = vdwg.mxu0
        %688 = vst [vmem:[%s283] sm:$0xff] %v449
        %689 = vst [vmem:[%s283 + $0x8] sm:$0xff] %v455
        %690 = vst [vmem:[%s283 + $0x10] sm:$0xff] %v461
        %691 = vst [vmem:[%s283 + $0x18] sm:$0xff] %v467
        %692 = vst [vmem:[%s283 + $0x20] sm:$0xff] %v473
        %693 = vst [vmem:[%s283 + $0x28] sm:$0xff] %v479
        %694 = vst [vmem:[%s283 + $0x30] sm:$0xff] %v485
        %695 = vst [vmem:[%s283 + $0x38] sm:$0xff] %v491
        %696 = vst [vmem:[%s283 + $0x40] sm:$0xff] %v497
        %697 = vst [vmem:[%s283 + $0x48] sm:$0xff] %v503
        %698 = vst [vmem:[%s283 + $0x50] sm:$0xff] %v509
        %699 = vst [vmem:[%s283 + $0x58] sm:$0xff] %v515
        %700 = vst [vmem:[%s283 + $0x60] sm:$0xff] %v521
        %701 = vst [vmem:[%s283 + $0x68] sm:$0xff] %v527
        %702 = vst [vmem:[%s283 + $0x70] sm:$0xff] %v533
        %703 = vst [vmem:[%s283 + $0x78] sm:$0xff] %v539
        %704 = vxpose.xlu0.b32.start [1/16] %v451, 128
        %705 = vxpose.xlu0.b32.cont [2/16] %v457, 128
        %706 = vxpose.xlu0.b32.cont [3/16] %v463, 128
        %707 = vxpose.xlu0.b32.cont [4/16] %v469, 128
        %708 = vxpose.xlu0.b32.cont [5/16] %v475, 128
        %709 = vxpose.xlu0.b32.cont [6/16] %v481, 128
        %710 = vxpose.xlu0.b32.cont [7/16] %v487, 128
        %711 = vxpose.xlu0.b32.cont [8/16] %v493, 128
        %712 = vxpose.xlu0.b32.cont [9/16] %v499, 128
        %713 = vxpose.xlu0.b32.cont [10/16] %v505, 128
        %714 = vxpose.xlu0.b32.cont [11/16] %v511, 128
        %715 = vxpose.xlu0.b32.cont [12/16] %v517, 128
        %716 = vxpose.xlu0.b32.cont [13/16] %v523, 128
        %717 = vxpose.xlu0.b32.cont [14/16] %v529, 128
        %718 = vxpose.xlu0.b32.cont [15/16] %v535, 128
        %719 = vxpose.xlu0.b32.end [16/16] %v541, 128
        %v720 = vpop.trf.xlu0
        %v721 = vpop.trf.xlu0
        %v722 = vpop.trf.xlu0
        %v723 = vpop.trf.xlu0
        %v724 = vpop.trf.xlu0
        %v725 = vpop.trf.xlu0
        %v726 = vpop.trf.xlu0
        %v727 = vpop.trf.xlu0
        %v728 = vpop.trf.xlu0
        %v729 = vpop.trf.xlu0
        %v730 = vpop.trf.xlu0
        %v731 = vpop.trf.xlu0
        %v732 = vpop.trf.xlu0
        %v733 = vpop.trf.xlu0
        %v734 = vpop.trf.xlu0
        %v735 = vpop.trf.xlu0
        %736 = vst [vmem:[%s290] sm:$0xff] %v720
        %737 = vst [vmem:[%s290 + $0x8] sm:$0xff] %v721
        %738 = vst [vmem:[%s290 + $0x10] sm:$0xff] %v722
        %739 = vst [vmem:[%s290 + $0x18] sm:$0xff] %v723
        %740 = vst [vmem:[%s290 + $0x20] sm:$0xff] %v724
        %741 = vst [vmem:[%s290 + $0x28] sm:$0xff] %v725
        %742 = vst [vmem:[%s290 + $0x30] sm:$0xff] %v726
        %743 = vst [vmem:[%s290 + $0x38] sm:$0xff] %v727
        %744 = vst [vmem:[%s290 + $0x40] sm:$0xff] %v728
        %745 = vst [vmem:[%s290 + $0x48] sm:$0xff] %v729
        %746 = vst [vmem:[%s290 + $0x50] sm:$0xff] %v730
        %747 = vst [vmem:[%s290 + $0x58] sm:$0xff] %v731
        %748 = vst [vmem:[%s290 + $0x60] sm:$0xff] %v732
        %749 = vst [vmem:[%s290 + $0x68] sm:$0xff] %v733
        %750 = vst [vmem:[%s290 + $0x70] sm:$0xff] %v734
        %751 = vst [vmem:[%s290 + $0x78] sm:$0xff] %v735
        %752 = vst [vmem:[%s297] sm:$0xff] %v610
        %753 = vst [vmem:[%s297 + $0x8] sm:$0xff] %v615
        %754 = vst [vmem:[%s297 + $0x10] sm:$0xff] %v620
        %755 = vst [vmem:[%s297 + $0x18] sm:$0xff] %v625
        %756 = vst [vmem:[%s297 + $0x20] sm:$0xff] %v630
        %757 = vst [vmem:[%s297 + $0x28] sm:$0xff] %v635
        %758 = vst [vmem:[%s297 + $0x30] sm:$0xff] %v640
        %759 = vst [vmem:[%s297 + $0x38] sm:$0xff] %v645
        %760 = vst [vmem:[%s297 + $0x40] sm:$0xff] %v650
        %761 = vst [vmem:[%s297 + $0x48] sm:$0xff] %v655
        %762 = vst [vmem:[%s297 + $0x50] sm:$0xff] %v660
        %763 = vst [vmem:[%s297 + $0x58] sm:$0xff] %v665
        %764 = vst [vmem:[%s297 + $0x60] sm:$0xff] %v670
        %765 = vst [vmem:[%s297 + $0x68] sm:$0xff] %v675
        %766 = vst [vmem:[%s297 + $0x70] sm:$0xff] %v680
        %767 = vst [vmem:[%s297 + $0x78] sm:$0xff] %v685
        %s768 = sand.u32 %s119, 1
        %s769 = scalar_lea.sflag [#allocation4], %s768
        %s770 = sand.u32 %s119, 1
        %s771 = smul.addr %s770, 128
        %s772 = scalar_lea.vmem [#allocation7], %s771
        %s773 = sand.u32 %s27, 1
        %s774 = scalar_lea.sflag [#allocation9], %s773
        %s775 = sand.u32 %s147, 1
        %s776 = smul.addr %s775, 128
        %s777 = scalar_lea.vmem [#allocation8], %s776
        %s778 = sand.u32 %s27, 1
        %s779 = scalar_lea.sflag [#allocation9], %s778
        %s780 = sand.u32 %s175, 1
        %s781 = smul.addr %s780, 128
        %s782 = scalar_lea.vmem [#allocation10], %s781
        // Predicated region
        $region41: #{tpu_custom_call.1} parent=31 // pred_check
          %p783 = pneg %p129
        $region42: #{tpu_custom_call.1} parent=31 // pred_check_branch
          %785 = sbr.rel (%p783) target = $region44
        $region43: #{tpu_custom_call.1} parent=31 // pred_region
          %s786 = smul.u32 16, %s32
          %s788 = ssub.s32 2048, 2048
          %789 = vsyncadd %s769, %s788
          %s790 = smul.addr %s31, 16
          %s791 = sadd.s32 %s786, %s790
          %s792 = smul.addr %s791, 128
          %s793 = scalar_lea.hbm %s3, %s792
          %s794 = sshll.u32 %s772, 4
          %s795 = int_to_ptr.vmem [resolvable:$true] %s794
          %800 = dma.vmem_to_hbm [thread:$0]  %s795, 2048, %s793, %s769, 128, 128, 8
        $region44: #{tpu_custom_call.1} parent=31 // pred_fallthru
          _
        // Predicated region
        $region45: #{tpu_custom_call.1} parent=31 // pred_check
          %p801 = pneg %p157
        $region46: #{tpu_custom_call.1} parent=31 // pred_check_branch
          %803 = sbr.rel (%p801) target = $region48
        $region47: #{tpu_custom_call.1} parent=31 // pred_region
          %s805 = ssub.s32 2048, 2048
          %806 = vsyncadd %s774, %s805
          %s807 = smul.addr %s31, 16
          %s808 = sadd.s32 %s32, %s807
          %s809 = smul.addr %s808, 128
          %s810 = scalar_lea.hbm %s4, %s809
          %s811 = sshll.u32 %s777, 4
          %s812 = int_to_ptr.vmem [resolvable:$true] %s811
          %817 = dma.vmem_to_hbm [thread:$0]  %s812, 2048, %s810, %s774, 128, 128, 8
        $region48: #{tpu_custom_call.1} parent=31 // pred_fallthru
          _
        // Predicated region
        $region49: #{tpu_custom_call.1} parent=31 // pred_check
          %p818 = pneg %p185
        $region50: #{tpu_custom_call.1} parent=31 // pred_check_branch
          %820 = sbr.rel (%p818) target = $region52
        $region51: #{tpu_custom_call.1} parent=31 // pred_region
          %s821 = smul.u32 16, %s32
          %s823 = ssub.s32 2048, 2048
          %824 = vsyncadd %s779, %s823
          %s825 = smul.addr %s31, 16
          %s826 = sadd.s32 %s821, %s825
          %s827 = smul.addr %s826, 128
          %s828 = scalar_lea.hbm %s5, %s827
          %s829 = sshll.u32 %s782, 4
          %s830 = int_to_ptr.vmem [resolvable:$true] %s829
          %835 = dma.vmem_to_hbm [thread:$0]  %s830, 2048, %s828, %s779, 128, 128, 8
        $region52: #{tpu_custom_call.1} parent=31 // pred_fallthru
          _
      $region32: #{tpu_custom_call.1} parent=5 // pred_fallthru
        _
      %p836 = scmp.le.s32.totalorder 2, %s22
      // Predicated region
      $region53: #{tpu_custom_call.1} parent=5 // pred_check
        %p837 = pneg %p836
      $region54: #{tpu_custom_call.1} parent=5 // pred_check_branch
        %839 = sbr.rel (%p837) target = $region56
      $region55: #{tpu_custom_call.1} parent=5 // pred_region
        %s840 = ssub.s32 %s22, 2
        // Predicated region
        $region57: #{tpu_custom_call.1} parent=55 // pred_check
          %p841 = pneg %p135
        $region58: #{tpu_custom_call.1} parent=55 // pred_check_branch
          %843 = sbr.rel (%p841) target = $region60
        $region59: #{tpu_custom_call.1} parent=55 // pred_region
          %s844 = sand.u32 %s120, 1
          %s845 = scalar_lea.sflag [#allocation4], %s844
          %s846 = sand.u32 %s120, 1
          %s847 = smul.addr %s846, 128
          %s848 = scalar_lea.vmem [#allocation7], %s847
          %849 = dma.done %s845, 2048
        $region60: #{tpu_custom_call.1} parent=55 // pred_fallthru
          _
        // Predicated region
        $region61: #{tpu_custom_call.1} parent=55 // pred_check
          %p850 = pneg %p163
        $region62: #{tpu_custom_call.1} parent=55 // pred_check_branch
          %852 = sbr.rel (%p850) target = $region64
        $region63: #{tpu_custom_call.1} parent=55 // pred_region
          %s853 = sand.u32 %s28, 1
          %s854 = scalar_lea.sflag [#allocation9], %s853
          %s855 = sand.u32 %s148, 1
          %s856 = smul.addr %s855, 128
          %s857 = scalar_lea.vmem [#allocation8], %s856
          %858 = dma.done %s854, 2048
        $region64: #{tpu_custom_call.1} parent=55 // pred_fallthru
          _
        // Predicated region
        $region65: #{tpu_custom_call.1} parent=55 // pred_check
          %p859 = pneg %p191
        $region66: #{tpu_custom_call.1} parent=55 // pred_check_branch
          %861 = sbr.rel (%p859) target = $region68
        $region67: #{tpu_custom_call.1} parent=55 // pred_region
          %s862 = sand.u32 %s28, 1
          %s863 = scalar_lea.sflag [#allocation9], %s862
          %s864 = sand.u32 %s176, 1
          %s865 = smul.addr %s864, 128
          %s866 = scalar_lea.vmem [#allocation10], %s865
          %867 = dma.done %s863, 2048
        $region68: #{tpu_custom_call.1} parent=55 // pred_fallthru
          _
      $region56: #{tpu_custom_call.1} parent=5 // pred_fallthru
        _
    $region6: #{tpu_custom_call.1} parent=1 // loop_footer
      %s26 = sadd.s32 1, %s22
    $region7: #{tpu_custom_call.1} parent=1 // loop_footer_branch
      %21 = sbr.rel target = $region3
    $region8: #{tpu_custom_call.1} parent=1 // loop_exit
      _
    %868 = vsyncpa [#allocation3], 1
    %s869 = scalar_lea.sflag [#allocation3], 1
    %870 = vsyncpa %s869, 1
    %871 = vsyncpa [#allocation6], 1
    %872 = vsyncpa [#allocation4], 1
    %s873 = scalar_lea.sflag [#allocation4], 1
    %874 = vsyncpa %s873, 1
    %875 = vsyncpa [#allocation9], 1
    %s876 = scalar_lea.sflag [#allocation9], 1
    %877 = vsyncpa %s876, 1

</llo_original>
